<compile_context>
chip_gen: v5e
topology: v5e:2x2
jax: 0.10.0
libtpu: 0.0.40
codegen_flags: <defaults>
</compile_context>

<pallas_src>
import functools
import math

import jax
import jax.numpy as jnp
from jax.experimental import pallas as pl
from jax.experimental.pallas import tpu as pltpu

LN_EPS = 1e-5


def _round_up(x, m):
    return (x + m - 1) // m * m


def _pad_lanes(a, width):
    """Pad the last (lane) dim of a 2-D array with zeros up to `width` (static)."""
    pad = width - a.shape[-1]
    if pad == 0:
        return a
    return jnp.concatenate(
        [a, jnp.zeros(a.shape[:-1] + (pad,), a.dtype)], axis=-1)


# ------------------------------------------------------------------------------------
# Fused per-sample kernel: emb + LN + ReLU -> point_conv + point_ln + ReLU ->
# DPI(identity) -> dpi_nl + ReLU + residual -> max_T -> max_N -> fused heads.
# ------------------------------------------------------------------------------------
def _fused_group_kernel(x_ref, w_emb_ref, bgb_ref, w_pc_ref, b_pc_ref, ln4_ref,
                        w_hd_ref, b_hd_ref, o_ref, *, T, N, Cl, HW, PW):
    # ----- fc_emb_1 (Linear): bf16 MXU operands, f32 result ------------------------
    x = x_ref[0].astype(jnp.bfloat16)                                   # (T*N, Din)
    y = jnp.dot(x, w_emb_ref[...], preferred_element_type=jnp.float32)
    y = y + bgb_ref[0:1, :]                                             # + bias

    # ----- nl_emb_1 (LayerNorm over NFB, per row) + ReLU (f32) ----------------------
    mu = jnp.mean(y, axis=-1, keepdims=True)
    var = jnp.mean((y - mu) ** 2, axis=-1, keepdims=True)
    yn = (y - mu) * jax.lax.rsqrt(var + LN_EPS)
    yn = yn * bgb_ref[1:2, :] + bgb_ref[2:3, :]
    yn = jnp.maximum(yn, 0.0)                                           # (T*N, NFB)

    # ----- point_conv (1x1 conv == channel matmul) + bias ---------------------------
    pc = jnp.dot(yn.astype(jnp.bfloat16), w_pc_ref[...],
                 preferred_element_type=jnp.float32) + b_pc_ref[...]    # (T*N, Cl)

    # ----- point_ln: LayerNorm([T, N, Cl]) -> scalar stats over the whole slab ------
    mu1 = jnp.mean(pc)
    var1 = jnp.mean((pc - mu1) ** 2)
    bfeat = (pc - mu1) * jax.lax.rsqrt(var1 + LN_EPS)
    bfeat = bfeat * ln4_ref[0] + ln4_ref[1]
    bfeat = jnp.maximum(bfeat, 0.0)                                     # (T*N, Cl)

    # TODO(synk): DPI (Multi_Dynamic_Inference) is an external module -> identity.
    g = bfeat

    # ----- dpi_nl (LayerNorm([T, N, Cl])) + ReLU, residual add (dropout = identity) -
    mu2 = jnp.mean(g)
    var2 = jnp.mean((g - mu2) ** 2)
    gn = (g - mu2) * jax.lax.rsqrt(var2 + LN_EPS)
    gn = gn * ln4_ref[2] + ln4_ref[3]
    gn = jnp.maximum(gn, 0.0)
    states = gn + bfeat                                                 # (T*N, Cl)

    # ----- max over frames T, then over boxes N -------------------------------------
    ind = states[0:N]
    for t in range(1, T):                    # T is tiny & static -> unrolled jnp.maximum
        ind = jnp.maximum(ind, states[t * N:(t + 1) * N])               # (N, Cl)
    grp = jnp.max(ind, axis=0, keepdims=True)                           # (1, Cl)

    # ----- fused fc_activities / fc_actions heads -----------------------------------
    feats = jnp.concatenate([grp, ind], axis=0)                         # (1+N, Cl) f32
    logits = jnp.dot(feats.astype(jnp.bfloat16), w_hd_ref[...],
                     preferred_element_type=jnp.float32) + b_hd_ref[...]  # (1+N, HW)

    # ----- single lane-dense output slab: rows [feats(pad->PW) ; logits(pad->PW)] ---
    o_ref[0] = jnp.concatenate(
        [_pad_lanes(feats, PW), _pad_lanes(logits, PW)], axis=0)        # (2*(1+N), PW)


def fused_group_forward(x, w_emb, bgb, w_pc, b_pc, ln4, w_hd, b_hd, *, T, N):
    """x: (B, T*N, Din) f32; weights packed (see pack_params). Returns (B, 2*(1+N), PW)."""
    B, TN, Din = x.shape
    NFB = w_emb.shape[1]
    Cl = w_pc.shape[1]
    HW = w_hd.shape[1]
    PW = max(HW, _round_up(Cl, 128))
    R = 1 + N

    kern = functools.partial(_fused_group_kernel, T=T, N=N, Cl=Cl, HW=HW, PW=PW)
    return pl.pallas_call(
        kern,
        out_shape=jax.ShapeDtypeStruct((B, 2 * R, PW), jnp.float32),
        grid=(B,),
        in_specs=[
            pl.BlockSpec((1, TN, Din), lambda b: (b, 0, 0)),     # per-sample activations
            pl.BlockSpec((Din, NFB), lambda b: (0, 0)),          # w_emb (bf16)
            pl.BlockSpec((3, NFB), lambda b: (0, 0)),            # [bias, gamma, beta]
            pl.BlockSpec((NFB, Cl), lambda b: (0, 0)),           # w_pc (bf16)
            pl.BlockSpec((1, Cl), lambda b: (0, 0)),             # b_pc
            pl.BlockSpec((4, TN, Cl), lambda b: (0, 0, 0)),      # point_ln / dpi_nl affine
            pl.BlockSpec((Cl, HW), lambda b: (0, 0)),            # fused head weights (bf16)
            pl.BlockSpec((1, HW), lambda b: (0, 0)),             # fused head bias
        ],
        out_specs=pl.BlockSpec((1, 2 * R, PW), lambda b: (b, 0, 0)),
        compiler_params=pltpu.CompilerParams(
            dimension_semantics=("parallel",),     # B axis: both v7x TCs take a sample
            vmem_limit_bytes=8 * 1024 * 1024,      # real footprint << 1 MiB
        ),
    )(x, w_emb, bgb, w_pc, b_pc, ln4, w_hd, b_hd)


# ------------------------------------------------------------------------------------
# Parameter packing (done once, outside jit): bf16 matmul weights, stacked LN params,
# padded/concatenated head weights (lane-dense 128-wide).
# ------------------------------------------------------------------------------------
def pack_params(params, num_activities, num_actions):
    Cl = params["w_pc"].shape[1]
    HW = _round_up(num_activities + num_actions, 128)
    w_hd = jnp.zeros((Cl, HW), jnp.float32)
    w_hd = w_hd.at[:, :num_activities].set(params["w_act"])
    w_hd = w_hd.at[:, num_activities:num_activities + num_actions].set(params["w_acs"])
    b_hd = jnp.zeros((1, HW), jnp.float32)
    b_hd = b_hd.at[0, :num_activities].set(params["b_act"])
    b_hd = b_hd.at[0, num_activities:num_activities + num_actions].set(params["b_acs"])
    return dict(
        w_emb=params["w_emb"].astype(jnp.bfloat16),
        bgb_emb=jnp.stack([params["b_emb"], params["g_emb"], params["be_emb"]]),
        w_pc=params["w_pc"].astype(jnp.bfloat16),
        b_pc=params["b_pc"].reshape(1, -1),
        ln4=jnp.stack([params["g_pln"], params["be_pln"],
                       params["g_dpi"], params["be_dpi"]]),
        w_heads=w_hd.astype(jnp.bfloat16),
        b_heads=b_hd,
    )


# ------------------------------------------------------------------------------------
# Full forward (lite_dim path, backbone='inv3', training_stage=3, eval mode).
# ------------------------------------------------------------------------------------
def group_relation_forward(boxes_features_roi, boxes_in, packed, cfg):
    del boxes_in  # only used by the dead iar_* branch on the stage-3 path
    B, T, N, Din = boxes_features_roi.shape
    Cl = cfg["lite_dim"]
    A = cfg["num_activities"]
    Ac = cfg["num_actions"]
    R = 1 + N

    x = boxes_features_roi.reshape(B, T * N, Din)          # free reshape, stays f32
    slab = fused_group_forward(
        x, packed["w_emb"], packed["bgb_emb"], packed["w_pc"], packed["b_pc"],
        packed["ln4"], packed["w_heads"], packed["b_heads"], T=T, N=N,
    )                                                      # (B, 2*(1+N), PW)

    group_feat = slab[:, 0, :Cl]                           # (B, Cl)
    individual_feat = slab[:, 1:R, :Cl].reshape(B, N * Cl)  # (B, N*Cl)
    activities = slab[:, R, :A]                            # (B, A)
    actions = slab[:, R + 1:2 * R, A:A + Ac].reshape(B * N, Ac)  # (B*N, Ac)

    return {
        "group_feat": group_feat,
        "individual_feat": individual_feat,
        "activities": activities,
        "actions": actions,
    }


# ------------------------------------------------------------------------------------
# Main
# ------------------------------------------------------------------------------------
if __name__ == "__main__":
    cfg = dict(
        num_frames=3,            # T
        num_boxes=4,             # N
        emb_features=8,          # D
        crop_size=(5, 5),        # K
        num_features_boxes=128,  # NFB
        lite_dim=64,             # in_dim / NFS
        image_size=(32, 32),     # H, W
        num_activities=8,
        num_actions=9,
    )
    B = 2
    T, N = cfg["num_frames"], cfg["num_boxes"]
    D, K = cfg["emb_features"], cfg["crop_size"][0]
    Din = K * K * D
    NFB, Cl = cfg["num_features_boxes"], cfg["lite_dim"]
    H, W = cfg["image_size"]

    key = jax.random.PRNGKey(0)
    ks = jax.random.split(key, 8)

    # kernel-pipeline inputs (see TODO(synk) about backbone + RoIAlign)
    boxes_features_roi = jax.random.normal(ks[0], (B, T, N, Din), jnp.float32)
    boxes_in = jax.random.uniform(
        ks[1], (B, T, N, 4), jnp.float32, 0.0, float(min(H, W) - 1)
    )

    params = dict(
        w_emb=jax.random.normal(ks[2], (Din, NFB), jnp.float32) * math.sqrt(2.0 / Din),
        b_emb=jnp.zeros((NFB,), jnp.float32),
        g_emb=jnp.ones((NFB,), jnp.float32),
        be_emb=jnp.zeros((NFB,), jnp.float32),
        w_pc=jax.random.normal(ks[3], (NFB, Cl), jnp.float32) * math.sqrt(1.0 / NFB),
        b_pc=jnp.zeros((Cl,), jnp.float32),
        g_pln=jnp.ones((T * N, Cl), jnp.float32),
        be_pln=jnp.zeros((T * N, Cl), jnp.float32),
        g_dpi=jnp.ones((T * N, Cl), jnp.float32),
        be_dpi=jnp.zeros((T * N, Cl), jnp.float32),
        w_act=jax.random.normal(ks[4], (Cl, cfg["num_activities"]), jnp.float32)
        * math.sqrt(2.0 / Cl),
        b_act=jnp.zeros((cfg["num_activities"],), jnp.float32),
        w_acs=jax.random.normal(ks[5], (Cl, cfg["num_actions"]), jnp.float32)
        * math.sqrt(2.0 / Cl),
        b_acs=jnp.zeros((cfg["num_actions"],), jnp.float32),
    )

    packed = pack_params(params, cfg["num_activities"], cfg["num_actions"])

    fwd = jax.jit(functools.partial(group_relation_forward, cfg=cfg))
    out = fwd(boxes_features_roi, boxes_in, packed)
    jax.block_until_ready(out)

    assert out["group_feat"].shape == (B, Cl)
    assert out["individual_feat"].shape == (B, N * Cl)
    assert out["activities"].shape == (B, cfg["num_activities"])
    assert out["actions"].shape == (B * N, cfg["num_actions"])
    assert all(bool(jnp.all(jnp.isfinite(v))) for v in out.values())
    print("KERNEL_OK")
</pallas_src>

<mosaic_0001>
module attributes {stable_mosaic.version = 11 : i64} {
  func.func @_fused_group_kernel(%arg0: i32, %arg1: memref<1x12x200xf32, #tpu.memory_space<vmem>>, %arg2: memref<200x128xbf16, #tpu.memory_space<vmem>>, %arg3: memref<3x128xf32, #tpu.memory_space<vmem>>, %arg4: memref<128x64xbf16, #tpu.memory_space<vmem>>, %arg5: memref<1x64xf32, #tpu.memory_space<vmem>>, %arg6: memref<4x12x64xf32, #tpu.memory_space<vmem>>, %arg7: memref<64x128xbf16, #tpu.memory_space<vmem>>, %arg8: memref<1x128xf32, #tpu.memory_space<vmem>>, %arg9: memref<1x10x128xf32, #tpu.memory_space<vmem>>) attributes {dimension_semantics = [#tpu.dimension_semantics<parallel>], iteration_bounds = array<i64: 2>, scalar_prefetch = 0 : i64, scratch_operands = 0 : i64, tpu.core_type = #tpu.core_type<tc>, window_params = [{transform_indices = @transform_0, window_bounds = array<i64: 1, 12, 200>}, {pipeline_mode = #tpu.pipeline_mode<synchronous>, transform_indices = @transform_1, window_bounds = array<i64: 200, 128>}, {pipeline_mode = #tpu.pipeline_mode<synchronous>, transform_indices = @transform_2, window_bounds = array<i64: 3, 128>}, {pipeline_mode = #tpu.pipeline_mode<synchronous>, transform_indices = @transform_3, window_bounds = array<i64: 128, 64>}, {pipeline_mode = #tpu.pipeline_mode<synchronous>, transform_indices = @transform_4, window_bounds = array<i64: 1, 64>}, {pipeline_mode = #tpu.pipeline_mode<synchronous>, transform_indices = @transform_5, window_bounds = array<i64: 4, 12, 64>}, {pipeline_mode = #tpu.pipeline_mode<synchronous>, transform_indices = @transform_6, window_bounds = array<i64: 64, 128>}, {pipeline_mode = #tpu.pipeline_mode<synchronous>, transform_indices = @transform_7, window_bounds = array<i64: 1, 128>}, {transform_indices = @transform_8, window_bounds = array<i64: 1, 10, 128>}]} {
    %c0 = arith.constant 0 : index
    %c0_0 = arith.constant 0 : index
    %c0_1 = arith.constant 0 : index
    %0 = vector.load %arg1[%c0, %c0_0, %c0_1] : memref<1x12x200xf32, #tpu.memory_space<vmem>>, vector<1x12x200xf32>
    %1 = vector.shape_cast %0 : vector<1x12x200xf32> to vector<12x200xf32>
    %2 = arith.truncf %1 : vector<12x200xf32> to vector<12x200xbf16>
    %c0_2 = arith.constant 0 : index
    %c0_3 = arith.constant 0 : index
    %3 = vector.load %arg2[%c0_2, %c0_3] : memref<200x128xbf16, #tpu.memory_space<vmem>>, vector<200x128xbf16>
    %cst = arith.constant dense<0.000000e+00> : vector<12x128xf32>
    %4 = tpu.matmul %2, %3, %cst {dimension_numbers = #tpu.dot_dimension_numbers<[1], [0], [0], [1], [0, 0, 1, 1], [], []>} : vector<12x200xbf16>, vector<200x128xbf16>, vector<12x128xf32> -> vector<12x128xf32>
    %c0_4 = arith.constant 0 : index
    %c0_5 = arith.constant 0 : index
    %5 = vector.load %arg3[%c0_4, %c0_5] : memref<3x128xf32, #tpu.memory_space<vmem>>, vector<1x128xf32>
    %6 = vector.broadcast %5 : vector<1x128xf32> to vector<12x128xf32>
    %7 = arith.addf %4, %6 : vector<12x128xf32>
    %cst_6 = arith.constant dense<0.000000e+00> : vector<12xf32>
    %8 = vector.multi_reduction <add>, %7, %cst_6 [1] : vector<12x128xf32> to vector<12xf32>
    %9 = vector.shape_cast %8 : vector<12xf32> to vector<12x1xf32>
    %cst_7 = arith.constant 1.280000e+02 : f32
    %10 = vector.broadcast %cst_7 : f32 to vector<12x1xf32>
    %11 = arith.divf %9, %10 : vector<12x1xf32>
    %12 = vector.broadcast %11 : vector<12x1xf32> to vector<12x128xf32>
    %13 = arith.subf %7, %12 : vector<12x128xf32>
    %14 = arith.mulf %13, %13 : vector<12x128xf32>
    %cst_8 = arith.constant dense<0.000000e+00> : vector<12xf32>
    %15 = vector.multi_reduction <add>, %14, %cst_8 [1] : vector<12x128xf32> to vector<12xf32>
    %16 = vector.shape_cast %15 : vector<12xf32> to vector<12x1xf32>
    %cst_9 = arith.constant 1.280000e+02 : f32
    %17 = vector.broadcast %cst_9 : f32 to vector<12x1xf32>
    %18 = arith.divf %16, %17 : vector<12x1xf32>
    %19 = vector.broadcast %11 : vector<12x1xf32> to vector<12x128xf32>
    %20 = arith.subf %7, %19 : vector<12x128xf32>
    %cst_10 = arith.constant 9.99999974E-6 : f32
    %21 = vector.broadcast %cst_10 : f32 to vector<12x1xf32>
    %22 = arith.addf %18, %21 : vector<12x1xf32>
    %23 = math.rsqrt %22 : vector<12x1xf32>
    %24 = vector.broadcast %23 : vector<12x1xf32> to vector<12x128xf32>
    %25 = arith.mulf %20, %24 : vector<12x128xf32>
    %c1 = arith.constant 1 : index
    %c0_11 = arith.constant 0 : index
    %26 = vector.load %arg3[%c1, %c0_11] : memref<3x128xf32, #tpu.memory_space<vmem>>, vector<1x128xf32>
    %27 = vector.broadcast %26 : vector<1x128xf32> to vector<12x128xf32>
    %28 = arith.mulf %25, %27 : vector<12x128xf32>
    %c2 = arith.constant 2 : index
    %c0_12 = arith.constant 0 : index
    %29 = vector.load %arg3[%c2, %c0_12] : memref<3x128xf32, #tpu.memory_space<vmem>>, vector<1x128xf32>
    %30 = vector.broadcast %29 : vector<1x128xf32> to vector<12x128xf32>
    %31 = arith.addf %28, %30 : vector<12x128xf32>
    %cst_13 = arith.constant 0.000000e+00 : f32
    %32 = vector.broadcast %cst_13 : f32 to vector<12x128xf32>
    %33 = arith.maximumf %31, %32 : vector<12x128xf32>
    %34 = arith.truncf %33 : vector<12x128xf32> to vector<12x128xbf16>
    %c0_14 = arith.constant 0 : index
    %c0_15 = arith.constant 0 : index
    %35 = vector.load %arg4[%c0_14, %c0_15] : memref<128x64xbf16, #tpu.memory_space<vmem>>, vector<128x64xbf16>
    %cst_16 = arith.constant dense<0.000000e+00> : vector<12x64xf32>
    %36 = tpu.matmul %34, %35, %cst_16 {dimension_numbers = #tpu.dot_dimension_numbers<[1], [0], [0], [1], [0, 0, 1, 1], [], []>} : vector<12x128xbf16>, vector<128x64xbf16>, vector<12x64xf32> -> vector<12x64xf32>
    %c0_17 = arith.constant 0 : index
    %c0_18 = arith.constant 0 : index
    %37 = vector.load %arg5[%c0_17, %c0_18] : memref<1x64xf32, #tpu.memory_space<vmem>>, vector<1x64xf32>
    %38 = vector.broadcast %37 : vector<1x64xf32> to vector<12x64xf32>
    %39 = arith.addf %36, %38 : vector<12x64xf32>
    %40 = vector.shape_cast %39 : vector<12x64xf32> to vector<1x12x64xf32>
    %cst_19 = arith.constant dense<0.000000e+00> : vector<1xf32>
    %41 = vector.multi_reduction <add>, %40, %cst_19 [1, 2] : vector<1x12x64xf32> to vector<1xf32>
    %42 = vector.shape_cast %41 : vector<1xf32> to vector<1x1x1xf32>
    %43 = vector.extract %42[0, 0, 0] : f32 from vector<1x1x1xf32>
    %cst_20 = arith.constant 7.680000e+02 : f32
    %44 = arith.divf %43, %cst_20 : f32
    %45 = vector.broadcast %44 : f32 to vector<12x64xf32>
    %46 = arith.subf %39, %45 : vector<12x64xf32>
    %47 = arith.mulf %46, %46 : vector<12x64xf32>
    %48 = vector.shape_cast %47 : vector<12x64xf32> to vector<1x12x64xf32>
    %cst_21 = arith.constant dense<0.000000e+00> : vector<1xf32>
    %49 = vector.multi_reduction <add>, %48, %cst_21 [1, 2] : vector<1x12x64xf32> to vector<1xf32>
    %50 = vector.shape_cast %49 : vector<1xf32> to vector<1x1x1xf32>
    %51 = vector.extract %50[0, 0, 0] : f32 from vector<1x1x1xf32>
    %cst_22 = arith.constant 7.680000e+02 : f32
    %52 = arith.divf %51, %cst_22 : f32
    %53 = vector.broadcast %44 : f32 to vector<12x64xf32>
    %54 = arith.subf %39, %53 : vector<12x64xf32>
    %cst_23 = arith.constant 9.99999974E-6 : f32
    %55 = arith.addf %52, %cst_23 : f32
    %56 = math.rsqrt %55 : f32
    %57 = vector.broadcast %56 : f32 to vector<12x64xf32>
    %58 = arith.mulf %54, %57 : vector<12x64xf32>
    %c0_24 = arith.constant 0 : index
    %c0_25 = arith.constant 0 : index
    %c0_26 = arith.constant 0 : index
    %59 = vector.load %arg6[%c0_24, %c0_25, %c0_26] : memref<4x12x64xf32, #tpu.memory_space<vmem>>, vector<1x12x64xf32>
    %60 = vector.shape_cast %59 : vector<1x12x64xf32> to vector<12x64xf32>
    %61 = arith.mulf %58, %60 : vector<12x64xf32>
    %c1_27 = arith.constant 1 : index
    %c0_28 = arith.constant 0 : index
    %c0_29 = arith.constant 0 : index
    %62 = vector.load %arg6[%c1_27, %c0_28, %c0_29] : memref<4x12x64xf32, #tpu.memory_space<vmem>>, vector<1x12x64xf32>
    %63 = vector.shape_cast %62 : vector<1x12x64xf32> to vector<12x64xf32>
    %64 = arith.addf %61, %63 : vector<12x64xf32>
    %cst_30 = arith.constant 0.000000e+00 : f32
    %65 = vector.broadcast %cst_30 : f32 to vector<12x64xf32>
    %66 = arith.maximumf %64, %65 : vector<12x64xf32>
    %67 = vector.shape_cast %66 : vector<12x64xf32> to vector<1x12x64xf32>
    %cst_31 = arith.constant dense<0.000000e+00> : vector<1xf32>
    %68 = vector.multi_reduction <add>, %67, %cst_31 [1, 2] : vector<1x12x64xf32> to vector<1xf32>
    %69 = vector.shape_cast %68 : vector<1xf32> to vector<1x1x1xf32>
    %70 = vector.extract %69[0, 0, 0] : f32 from vector<1x1x1xf32>
    %cst_32 = arith.constant 7.680000e+02 : f32
    %71 = arith.divf %70, %cst_32 : f32
    %72 = vector.broadcast %71 : f32 to vector<12x64xf32>
    %73 = arith.subf %66, %72 : vector<12x64xf32>
    %74 = arith.mulf %73, %73 : vector<12x64xf32>
    %75 = vector.shape_cast %74 : vector<12x64xf32> to vector<1x12x64xf32>
    %cst_33 = arith.constant dense<0.000000e+00> : vector<1xf32>
    %76 = vector.multi_reduction <add>, %75, %cst_33 [1, 2] : vector<1x12x64xf32> to vector<1xf32>
    %77 = vector.shape_cast %76 : vector<1xf32> to vector<1x1x1xf32>
    %78 = vector.extract %77[0, 0, 0] : f32 from vector<1x1x1xf32>
    %cst_34 = arith.constant 7.680000e+02 : f32
    %79 = arith.divf %78, %cst_34 : f32
    %80 = vector.broadcast %71 : f32 to vector<12x64xf32>
    %81 = arith.subf %66, %80 : vector<12x64xf32>
    %cst_35 = arith.constant 9.99999974E-6 : f32
    %82 = arith.addf %79, %cst_35 : f32
    %83 = math.rsqrt %82 : f32
    %84 = vector.broadcast %83 : f32 to vector<12x64xf32>
    %85 = arith.mulf %81, %84 : vector<12x64xf32>
    %c2_36 = arith.constant 2 : index
    %c0_37 = arith.constant 0 : index
    %c0_38 = arith.constant 0 : index
    %86 = vector.load %arg6[%c2_36, %c0_37, %c0_38] : memref<4x12x64xf32, #tpu.memory_space<vmem>>, vector<1x12x64xf32>
    %87 = vector.shape_cast %86 : vector<1x12x64xf32> to vector<12x64xf32>
    %88 = arith.mulf %85, %87 : vector<12x64xf32>
    %c3 = arith.constant 3 : index
    %c0_39 = arith.constant 0 : index
    %c0_40 = arith.constant 0 : index
    %89 = vector.load %arg6[%c3, %c0_39, %c0_40] : memref<4x12x64xf32, #tpu.memory_space<vmem>>, vector<1x12x64xf32>
    %90 = vector.shape_cast %89 : vector<1x12x64xf32> to vector<12x64xf32>
    %91 = arith.addf %88, %90 : vector<12x64xf32>
    %cst_41 = arith.constant 0.000000e+00 : f32
    %92 = vector.broadcast %cst_41 : f32 to vector<12x64xf32>
    %93 = arith.maximumf %91, %92 : vector<12x64xf32>
    %94 = arith.addf %93, %66 : vector<12x64xf32>
    %95 = vector.extract_strided_slice %94 {offsets = [0, 0], sizes = [4, 64], strides = [1, 1]} : vector<12x64xf32> to vector<4x64xf32>
    %96 = vector.extract_strided_slice %94 {offsets = [4, 0], sizes = [4, 64], strides = [1, 1]} : vector<12x64xf32> to vector<4x64xf32>
    %97 = arith.maximumf %95, %96 : vector<4x64xf32>
    %98 = vector.extract_strided_slice %94 {offsets = [8, 0], sizes = [4, 64], strides = [1, 1]} : vector<12x64xf32> to vector<4x64xf32>
    %99 = arith.maximumf %97, %98 : vector<4x64xf32>
    %cst_42 = arith.constant dense<0xFF800000> : vector<64xf32>
    %100 = vector.multi_reduction <maximumf>, %99, %cst_42 [0] : vector<4x64xf32> to vector<64xf32>
    %101 = vector.shape_cast %100 : vector<64xf32> to vector<1x64xf32>
    %102 = tpu.concatenate %101, %99 in 0 : vector<1x64xf32>, vector<4x64xf32> -> vector<5x64xf32>
    %103 = arith.truncf %102 : vector<5x64xf32> to vector<5x64xbf16>
    %c0_43 = arith.constant 0 : index
    %c0_44 = arith.constant 0 : index
    %104 = vector.load %arg7[%c0_43, %c0_44] : memref<64x128xbf16, #tpu.memory_space<vmem>>, vector<64x128xbf16>
    %cst_45 = arith.constant dense<0.000000e+00> : vector<5x128xf32>
    %105 = tpu.matmul %103, %104, %cst_45 {dimension_numbers = #tpu.dot_dimension_numbers<[1], [0], [0], [1], [0, 0, 1, 1], [], []>} : vector<5x64xbf16>, vector<64x128xbf16>, vector<5x128xf32> -> vector<5x128xf32>
    %c0_46 = arith.constant 0 : index
    %c0_47 = arith.constant 0 : index
    %106 = vector.load %arg8[%c0_46, %c0_47] : memref<1x128xf32, #tpu.memory_space<vmem>>, vector<1x128xf32>
    %107 = vector.broadcast %106 : vector<1x128xf32> to vector<5x128xf32>
    %108 = arith.addf %105, %107 : vector<5x128xf32>
    %cst_48 = arith.constant 0.000000e+00 : f32
    %109 = vector.broadcast %cst_48 : f32 to vector<5x64xf32>
    %110 = tpu.concatenate %102, %109 in 1 : vector<5x64xf32>, vector<5x64xf32> -> vector<5x128xf32>
    %111 = tpu.concatenate %110, %108 in 0 : vector<5x128xf32>, vector<5x128xf32> -> vector<10x128xf32>
    %c0_49 = arith.constant 0 : index
    %c0_50 = arith.constant 0 : index
    %c0_51 = arith.constant 0 : index
    %112 = vector.load %arg9[%c0_49, %c0_50, %c0_51] : memref<1x10x128xf32, #tpu.memory_space<vmem>>, vector<1x10x128xf32>
    %113 = vector.shape_cast %112 : vector<1x10x128xf32> to vector<10x128xf32>
    %114 = vector.shape_cast %111 : vector<10x128xf32> to vector<1x10x128xf32>
    tpu.vector_store %arg9[%c0_49, %c0_50, %c0_51], %114 {strides = array<i32>} : memref<1x10x128xf32, #tpu.memory_space<vmem>>, vector<1x10x128xf32>,
    return
  }
  func.func @transform_0(%arg0: i32) -> (i32, i32, i32) {
    %c0_i32 = arith.constant 0 : i32
    %c0_i32_0 = arith.constant 0 : i32
    %c0_i32_1 = arith.constant 0 : i32
    return %arg0, %c0_i32, %c0_i32_0 : i32, i32, i32
  }
  func.func @transform_1(%arg0: i32) -> (i32, i32) {
    %c0_i32 = arith.constant 0 : i32
    %c0_i32_0 = arith.constant 0 : i32
    %c0_i32_1 = arith.constant 0 : i32
    return %c0_i32, %c0_i32_0 : i32, i32
  }
  func.func @transform_2(%arg0: i32) -> (i32, i32) {
    %c0_i32 = arith.constant 0 : i32
    %c0_i32_0 = arith.constant 0 : i32
    %c0_i32_1 = arith.constant 0 : i32
    return %c0_i32, %c0_i32_0 : i32, i32
  }
  func.func @transform_3(%arg0: i32) -> (i32, i32) {
    %c0_i32 = arith.constant 0 : i32
    %c0_i32_0 = arith.constant 0 : i32
    %c0_i32_1 = arith.constant 0 : i32
    return %c0_i32, %c0_i32_0 : i32, i32
  }
  func.func @transform_4(%arg0: i32) -> (i32, i32) {
    %c0_i32 = arith.constant 0 : i32
    %c0_i32_0 = arith.constant 0 : i32
    %c0_i32_1 = arith.constant 0 : i32
    return %c0_i32, %c0_i32_0 : i32, i32
  }
  func.func @transform_5(%arg0: i32) -> (i32, i32, i32) {
    %c0_i32 = arith.constant 0 : i32
    %c0_i32_0 = arith.constant 0 : i32
    %c0_i32_1 = arith.constant 0 : i32
    %c0_i32_2 = arith.constant 0 : i32
    return %c0_i32, %c0_i32_0, %c0_i32_1 : i32, i32, i32
  }
  func.func @transform_6(%arg0: i32) -> (i32, i32) {
    %c0_i32 = arith.constant 0 : i32
    %c0_i32_0 = arith.constant 0 : i32
    %c0_i32_1 = arith.constant 0 : i32
    return %c0_i32, %c0_i32_0 : i32, i32
  }
  func.func @transform_7(%arg0: i32) -> (i32, i32) {
    %c0_i32 = arith.constant 0 : i32
    %c0_i32_0 = arith.constant 0 : i32
    %c0_i32_1 = arith.constant 0 : i32
    return %c0_i32, %c0_i32_0 : i32, i32
  }
  func.func @transform_8(%arg0: i32) -> (i32, i32, i32) {
    %c0_i32 = arith.constant 0 : i32
    %c0_i32_0 = arith.constant 0 : i32
    %c0_i32_1 = arith.constant 0 : i32
    return %arg0, %c0_i32, %c0_i32_0 : i32, i32, i32
  }
}

</mosaic_0001>

<llo_original>
// kernel: group_relation_forward.1
$region0: #{group_relation_forward.1}
  #allocation0 [shape = 'u32[]', space=smem, size = 0x4, offset = 0x4, fixed_abs, tag = 'smem constant byte address 0x4 - core index']
  #allocation1 [shape = 'u32[72,128]{1,0:T(1,128)}', space=vmem, size = 0x9000, scoped, tag = 'internal scratch']
  %s0 = inlined_call_operand.vmem [shape: f32[2,12,200], index: 0, kind: input, shape index: {}]
  %s1 = inlined_call_operand.vmem [shape: bf16[200,128], index: 1, kind: input, shape index: {}]
  %s2 = inlined_call_operand.vmem [shape: f32[3,128], index: 2, kind: input, shape index: {}]
  %s3 = inlined_call_operand.vmem [shape: bf16[128,64], index: 3, kind: input, shape index: {}]
  %s4 = inlined_call_operand.vmem [shape: f32[1,64], index: 4, kind: input, shape index: {}]
  %s5 = inlined_call_operand.vmem [shape: f32[4,12,64], index: 5, kind: input, shape index: {}]
  %s6 = inlined_call_operand.vmem [shape: bf16[64,128], index: 6, kind: input, shape index: {}]
  %s7 = inlined_call_operand.vmem [shape: f32[1,128], index: 7, kind: input, shape index: {}]
  %s8 = inlined_call_operand.vmem [shape: f32[2,10,128], index: 8, kind: output, shape index: {}]
  %s9 = sld [smem:[#allocation0]]
  $region65: #{group_relation_forward.1} parent=0
    _
  %s11 = ssub.s32 1, %s9
  %s12 = scalar_select 0, %s11, %s9
  loop: start=0, step=1, limit=4
  $region2: #{group_relation_forward.1} parent=0 // loop_pre_header
    _
  $region3: #{group_relation_forward.1} parent=0 // loop_header
    %s14 = sphi 0, %s18
    %p15 = scmp.ge.s32.totalorder %s14, 4
    %s24 = sphi 0, %s26
    %s27 = sphi 0, %s24
    %s28 = sphi 0, %s27
    %s44 = sphi 0, %s28
    %s48 = sphi 0, %s48
    %s50 = sphi 0, %s48
    %s51 = sphi 0, %s50
    %s65 = sphi 0, %s51
    %s69 = sphi 0, %s69
    %s71 = sphi 0, %s69
    %s72 = sphi 0, %s71
    %s86 = sphi 0, %s72
    %s90 = sphi 0, %s90
    %s92 = sphi 0, %s90
    %s93 = sphi 0, %s92
    %s107 = sphi 0, %s93
    %s111 = sphi 0, %s111
    %s113 = sphi 0, %s111
    %s114 = sphi 0, %s113
    %s128 = sphi 0, %s114
    %s132 = sphi 0, %s132
    %s134 = sphi 0, %s132
    %s135 = sphi 0, %s134
    %s149 = sphi 0, %s135
    %s153 = sphi 0, %s153
    %s155 = sphi 0, %s153
    %s156 = sphi 0, %s155
    %s170 = sphi 0, %s156
    %s174 = sphi 0, %s174
    %s176 = sphi 0, %s174
    %s177 = sphi 0, %s176
    %s191 = sphi 0, %s177
    %s197 = sphi 0, %s199
    %s200 = sphi 0, %s197
    %s201 = sphi 0, %s200
    %s217 = sphi 0, %s201
  $region4: #{group_relation_forward.1} parent=0 // loop_header_branch
    %17 = sbr.rel (%p15) target = $region8
  $region5: #{group_relation_forward.1} parent=0 // loop_body
    %s19 = ssub.s32 %s14, 1
    %s20 = ssub.s32 %s14, 2
    %s21 = sadd.s32 %s14, 1
    %s22 = ssub.s32 %s14, %s21
    %p23 = scmp.eq.s32.totalorder %s22, 0
    %s25 = sadd.s32 %s24, 1
    %s26 = scalar_select %p23, %s24, %s25
    %p29 = pneg %p23
    %p30 = scmp.eq.s32.totalorder %s14, 1
    %p31 = por %p29, %p30
    %p32 = scmp.ne.s32.totalorder %s24, %s27
    %p33 = scmp.eq.s32.totalorder %s14, 0
    %p34 = por %p32, %p33
    %p35 = scmp.ne.s32.totalorder %s24, %s27
    %p36 = scmp.eq.s32.totalorder %s19, 1
    %p37 = por %p35, %p36
    %p38 = scmp.ne.s32.totalorder %s27, %s28
    %p39 = scmp.eq.s32.totalorder %s19, 0
    %p40 = por %p38, %p39
    %p41 = scmp.ne.s32.totalorder %s27, %s28
    %p42 = scmp.eq.s32.totalorder %s20, 1
    %p43 = por %p41, %p42
    %p45 = scmp.ne.s32.totalorder %s28, %s44
    %p46 = scmp.eq.s32.totalorder %s20, 0
    %p47 = por %p45, %p46
    %s49 = sadd.s32 %s48, 1
    %p52 = scmp.eq.s32.totalorder %s14, 1
    %p53 = scmp.ne.s32.totalorder %s48, %s50
    %p54 = scmp.eq.s32.totalorder %s14, 0
    %p55 = por %p53, %p54
    %p56 = scmp.ne.s32.totalorder %s48, %s50
    %p57 = scmp.eq.s32.totalorder %s19, 1
    %p58 = por %p56, %p57
    %p59 = scmp.ne.s32.totalorder %s50, %s51
    %p60 = scmp.eq.s32.totalorder %s19, 0
    %p61 = por %p59, %p60
    %p62 = scmp.ne.s32.totalorder %s50, %s51
    %p63 = scmp.eq.s32.totalorder %s20, 1
    %p64 = por %p62, %p63
    %p66 = scmp.ne.s32.totalorder %s51, %s65
    %p67 = scmp.eq.s32.totalorder %s20, 0
    %p68 = por %p66, %p67
    %s70 = sadd.s32 %s69, 1
    %p73 = scmp.eq.s32.totalorder %s14, 1
    %p74 = scmp.ne.s32.totalorder %s69, %s71
    %p75 = scmp.eq.s32.totalorder %s14, 0
    %p76 = por %p74, %p75
    %p77 = scmp.ne.s32.totalorder %s69, %s71
    %p78 = scmp.eq.s32.totalorder %s19, 1
    %p79 = por %p77, %p78
    %p80 = scmp.ne.s32.totalorder %s71, %s72
    %p81 = scmp.eq.s32.totalorder %s19, 0
    %p82 = por %p80, %p81
    %p83 = scmp.ne.s32.totalorder %s71, %s72
    %p84 = scmp.eq.s32.totalorder %s20, 1
    %p85 = por %p83, %p84
    %p87 = scmp.ne.s32.totalorder %s72, %s86
    %p88 = scmp.eq.s32.totalorder %s20, 0
    %p89 = por %p87, %p88
    %s91 = sadd.s32 %s90, 1
    %p94 = scmp.eq.s32.totalorder %s14, 1
    %p95 = scmp.ne.s32.totalorder %s90, %s92
    %p96 = scmp.eq.s32.totalorder %s14, 0
    %p97 = por %p95, %p96
    %p98 = scmp.ne.s32.totalorder %s90, %s92
    %p99 = scmp.eq.s32.totalorder %s19, 1
    %p100 = por %p98, %p99
    %p101 = scmp.ne.s32.totalorder %s92, %s93
    %p102 = scmp.eq.s32.totalorder %s19, 0
    %p103 = por %p101, %p102
    %p104 = scmp.ne.s32.totalorder %s92, %s93
    %p105 = scmp.eq.s32.totalorder %s20, 1
    %p106 = por %p104, %p105
    %p108 = scmp.ne.s32.totalorder %s93, %s107
    %p109 = scmp.eq.s32.totalorder %s20, 0
    %p110 = por %p108, %p109
    %s112 = sadd.s32 %s111, 1
    %p115 = scmp.eq.s32.totalorder %s14, 1
    %p116 = scmp.ne.s32.totalorder %s111, %s113
    %p117 = scmp.eq.s32.totalorder %s14, 0
    %p118 = por %p116, %p117
    %p119 = scmp.ne.s32.totalorder %s111, %s113
    %p120 = scmp.eq.s32.totalorder %s19, 1
    %p121 = por %p119, %p120
    %p122 = scmp.ne.s32.totalorder %s113, %s114
    %p123 = scmp.eq.s32.totalorder %s19, 0
    %p124 = por %p122, %p123
    %p125 = scmp.ne.s32.totalorder %s113, %s114
    %p126 = scmp.eq.s32.totalorder %s20, 1
    %p127 = por %p125, %p126
    %p129 = scmp.ne.s32.totalorder %s114, %s128
    %p130 = scmp.eq.s32.totalorder %s20, 0
    %p131 = por %p129, %p130
    %s133 = sadd.s32 %s132, 1
    %p136 = scmp.eq.s32.totalorder %s14, 1
    %p137 = scmp.ne.s32.totalorder %s132, %s134
    %p138 = scmp.eq.s32.totalorder %s14, 0
    %p139 = por %p137, %p138
    %p140 = scmp.ne.s32.totalorder %s132, %s134
    %p141 = scmp.eq.s32.totalorder %s19, 1
    %p142 = por %p140, %p141
    %p143 = scmp.ne.s32.totalorder %s134, %s135
    %p144 = scmp.eq.s32.totalorder %s19, 0
    %p145 = por %p143, %p144
    %p146 = scmp.ne.s32.totalorder %s134, %s135
    %p147 = scmp.eq.s32.totalorder %s20, 1
    %p148 = por %p146, %p147
    %p150 = scmp.ne.s32.totalorder %s135, %s149
    %p151 = scmp.eq.s32.totalorder %s20, 0
    %p152 = por %p150, %p151
    %s154 = sadd.s32 %s153, 1
    %p157 = scmp.eq.s32.totalorder %s14, 1
    %p158 = scmp.ne.s32.totalorder %s153, %s155
    %p159 = scmp.eq.s32.totalorder %s14, 0
    %p160 = por %p158, %p159
    %p161 = scmp.ne.s32.totalorder %s153, %s155
    %p162 = scmp.eq.s32.totalorder %s19, 1
    %p163 = por %p161, %p162
    %p164 = scmp.ne.s32.totalorder %s155, %s156
    %p165 = scmp.eq.s32.totalorder %s19, 0
    %p166 = por %p164, %p165
    %p167 = scmp.ne.s32.totalorder %s155, %s156
    %p168 = scmp.eq.s32.totalorder %s20, 1
    %p169 = por %p167, %p168
    %p171 = scmp.ne.s32.totalorder %s156, %s170
    %p172 = scmp.eq.s32.totalorder %s20, 0
    %p173 = por %p171, %p172
    %s175 = sadd.s32 %s174, 1
    %p178 = scmp.eq.s32.totalorder %s14, 1
    %p179 = scmp.ne.s32.totalorder %s174, %s176
    %p180 = scmp.eq.s32.totalorder %s14, 0
    %p181 = por %p179, %p180
    %p182 = scmp.ne.s32.totalorder %s174, %s176
    %p183 = scmp.eq.s32.totalorder %s19, 1
    %p184 = por %p182, %p183
    %p185 = scmp.ne.s32.totalorder %s176, %s177
    %p186 = scmp.eq.s32.totalorder %s19, 0
    %p187 = por %p185, %p186
    %p188 = scmp.ne.s32.totalorder %s176, %s177
    %p189 = scmp.eq.s32.totalorder %s20, 1
    %p190 = por %p188, %p189
    %p192 = scmp.ne.s32.totalorder %s177, %s191
    %p193 = scmp.eq.s32.totalorder %s20, 0
    %p194 = por %p192, %p193
    %s195 = ssub.s32 %s14, %s21
    %p196 = scmp.eq.s32.totalorder %s195, 0
    %s198 = sadd.s32 %s197, 1
    %s199 = scalar_select %p196, %s197, %s198
    %p202 = pneg %p196
    %p203 = scmp.eq.s32.totalorder %s14, 1
    %p204 = por %p202, %p203
    %p205 = scmp.ne.s32.totalorder %s197, %s200
    %p206 = scmp.eq.s32.totalorder %s14, 0
    %p207 = por %p205, %p206
    %p208 = scmp.ne.s32.totalorder %s197, %s200
    %p209 = scmp.eq.s32.totalorder %s19, 1
    %p210 = por %p208, %p209
    %p211 = scmp.ne.s32.totalorder %s200, %s201
    %p212 = scmp.eq.s32.totalorder %s19, 0
    %p213 = por %p211, %p212
    %p214 = scmp.ne.s32.totalorder %s200, %s201
    %p215 = scmp.eq.s32.totalorder %s20, 1
    %p216 = por %p214, %p215
    %p218 = scmp.ne.s32.totalorder %s201, %s217
    %p219 = scmp.eq.s32.totalorder %s20, 0
    %p220 = por %p218, %p219
    %p221 = scmp.le.s32.totalorder 1, %s14
    %p222 = scmp.lt.s32.totalorder %s14, 3
    %p223 = pnand %p221, %p222
    %p224 = pneg %p223
    // Predicated region
    $region9: #{group_relation_forward.1} parent=5 // pred_check
      _
    $region10: #{group_relation_forward.1} parent=5 // pred_check_branch
      %226 = sbr.rel (%p223) target = $region12
    $region11: #{group_relation_forward.1} parent=5 // pred_region
      %s227 = ssub.s32 %s14, 1
      // Predicated region
      $region13: #{group_relation_forward.1} parent=11 // pred_check
        %p228 = pneg %p61
      $region14: #{group_relation_forward.1} parent=11 // pred_check_branch
        %230 = sbr.rel (%p228) target = $region16
      $region15: #{group_relation_forward.1} parent=11 // pred_region
        _
      $region16: #{group_relation_forward.1} parent=11 // pred_fallthru
        _
      // Predicated region
      $region17: #{group_relation_forward.1} parent=11 // pred_check
        %p231 = pneg %p82
      $region18: #{group_relation_forward.1} parent=11 // pred_check_branch
        %233 = sbr.rel (%p231) target = $region20
      $region19: #{group_relation_forward.1} parent=11 // pred_region
        _
      $region20: #{group_relation_forward.1} parent=11 // pred_fallthru
        _
      // Predicated region
      $region21: #{group_relation_forward.1} parent=11 // pred_check
        %p234 = pneg %p103
      $region22: #{group_relation_forward.1} parent=11 // pred_check_branch
        %236 = sbr.rel (%p234) target = $region24
      $region23: #{group_relation_forward.1} parent=11 // pred_region
        _
      $region24: #{group_relation_forward.1} parent=11 // pred_fallthru
        _
      // Predicated region
      $region25: #{group_relation_forward.1} parent=11 // pred_check
        %p237 = pneg %p124
      $region26: #{group_relation_forward.1} parent=11 // pred_check_branch
        %239 = sbr.rel (%p237) target = $region28
      $region27: #{group_relation_forward.1} parent=11 // pred_region
        _
      $region28: #{group_relation_forward.1} parent=11 // pred_fallthru
        _
      // Predicated region
      $region29: #{group_relation_forward.1} parent=11 // pred_check
        %p240 = pneg %p145
      $region30: #{group_relation_forward.1} parent=11 // pred_check_branch
        %242 = sbr.rel (%p240) target = $region32
      $region31: #{group_relation_forward.1} parent=11 // pred_region
        _
      $region32: #{group_relation_forward.1} parent=11 // pred_fallthru
        _
      // Predicated region
      $region33: #{group_relation_forward.1} parent=11 // pred_check
        %p243 = pneg %p166
      $region34: #{group_relation_forward.1} parent=11 // pred_check_branch
        %245 = sbr.rel (%p243) target = $region36
      $region35: #{group_relation_forward.1} parent=11 // pred_region
        _
      $region36: #{group_relation_forward.1} parent=11 // pred_fallthru
        _
      // Predicated region
      $region37: #{group_relation_forward.1} parent=11 // pred_check
        %p246 = pneg %p187
      $region38: #{group_relation_forward.1} parent=11 // pred_check_branch
        %248 = sbr.rel (%p246) target = $region40
      $region39: #{group_relation_forward.1} parent=11 // pred_region
        _
      $region40: #{group_relation_forward.1} parent=11 // pred_fallthru
        _
    $region12: #{group_relation_forward.1} parent=5 // pred_fallthru
      _
    %p249 = scmp.lt.s32.totalorder %s14, 2
    // Predicated region
    $region41: #{group_relation_forward.1} parent=5 // pred_check
      %p250 = pneg %p249
    $region42: #{group_relation_forward.1} parent=5 // pred_check_branch
      %252 = sbr.rel (%p250) target = $region44
    $region43: #{group_relation_forward.1} parent=5 // pred_region
      // Predicated region
      $region45: #{group_relation_forward.1} parent=43 // pred_check
        %p253 = pneg %p34
      $region46: #{group_relation_forward.1} parent=43 // pred_check_branch
        %255 = sbr.rel (%p253) target = $region48
      $region47: #{group_relation_forward.1} parent=43 // pred_region
        %p256 = scmp.lt.s32.totalorder %s14, 1
        %s257 = scalar_select %p256, %s14, 1
        %s258 = smul.addr %s257, 4
        %s259 = smul.addr %s258, 8
        %s260 = scalar_lea.vmem %s0, %s259
      $region48: #{group_relation_forward.1} parent=43 // pred_fallthru
        _
    $region44: #{group_relation_forward.1} parent=5 // pred_fallthru
      _
    %p261 = scmp.le.s32.totalorder 1, %s14
    %p262 = scmp.lt.s32.totalorder %s14, 3
    %p263 = pnand %p261, %p262
    %p264 = pneg %p263
    // Predicated region
    $region49: #{group_relation_forward.1} parent=5 // pred_check
      _
    $region50: #{group_relation_forward.1} parent=5 // pred_check_branch
      %266 = sbr.rel (%p263) target = $region52
    $region51: #{group_relation_forward.1} parent=5 // pred_region
      %s267 = ssub.s32 %s14, 1
      %p268 = scmp.lt.s32.totalorder %s19, 1
      %s269 = scalar_select %p268, %s19, 1
      %s270 = smul.addr %s269, 4
      %s271 = smul.addr %s270, 8
      %s272 = scalar_lea.vmem %s0, %s271
      %p273 = pneg %p40
      %p274 = pneg %p37
      %p275 = pneg %p61
      %p276 = pneg %p58
      %p277 = pneg %p82
      %p278 = pneg %p79
      %p279 = pneg %p103
      %p280 = pneg %p100
      %p281 = pneg %p124
      %p282 = pneg %p121
      %p283 = pneg %p145
      %p284 = pneg %p142
      %p285 = pneg %p166
      %p286 = pneg %p163
      %p287 = pneg %p187
      %p288 = pneg %p184
      %p289 = pneg %p213
      %p290 = pneg %p210
      %p291 = scmp.lt.s32.totalorder %s19, 1
      %s292 = scalar_select %p291, %s19, 1
      %s293 = smul.addr %s292, 2
      %s294 = smul.addr %s293, 8
      %s295 = scalar_lea.vmem %s8, %s294
      %p296 = scmp.lt.s32.totalorder %s19, 1
      %s297 = scalar_select %p296, %s19, 1
      %s298 = smul.addr %s297, 4
      %s299 = smul.addr %s298, 8
      %s300 = scalar_lea.vmem %s0, %s299
      %p301 = scmp.lt.s32.totalorder %s19, 1
      %s302 = scalar_select %p301, %s19, 1
      %s303 = smul.addr %s302, 2
      %s304 = smul.addr %s303, 8
      %s305 = scalar_lea.vmem %s8, %s304
      %v307 = vld [vmem:[%s300] sm:$0xff]
      %v308 = vld [vmem:[%s300 + $0x8] sm:$0xff]
      %v309 = vld [vmem:[%s300 + $0x10] sm:$0xf]
      %v310 = vld [vmem:[%s300 + $0x18] sm:$0xf]
      %v311 = vpack.c.bf16 %v309, %v307
      %v312 = vpack.c.bf16 %v310, %v308
      %v313 = vld [vmem:[%s1] sm:$0xf]
      %v314 = vld [vmem:[%s1 + $0x4] sm:$0xf]
      %v315 = vld [vmem:[%s1 + $0x8] sm:$0xf]
      %v316 = vld [vmem:[%s1 + $0xc] sm:$0xf]
      %v317 = vld [vmem:[%s1 + $0x10] sm:$0xf]
      %v318 = vld [vmem:[%s1 + $0x14] sm:$0xf]
      %v319 = vld [vmem:[%s1 + $0x18] sm:$0xf]
      %v320 = vld [vmem:[%s1 + $0x1c] sm:$0xf]
      %v321 = vld [vmem:[%s1 + $0x20] sm:$0xf]
      %v322 = vld [vmem:[%s1 + $0x24] sm:$0xf]
      %v323 = vld [vmem:[%s1 + $0x28] sm:$0xf]
      %v324 = vld [vmem:[%s1 + $0x2c] sm:$0xf]
      %v325 = vld [vmem:[%s1 + $0x30] sm:$0xf]
      %v326 = vld [vmem:[%s1 + $0x34] sm:$0xf]
      %v327 = vld [vmem:[%s1 + $0x38] sm:$0xf]
      %v328 = vld [vmem:[%s1 + $0x3c] sm:$0xf]
      %v329 = vld [vmem:[%s1 + $0x40] sm:$0xf]
      %v330 = vld [vmem:[%s1 + $0x44] sm:$0xf]
      %v331 = vld [vmem:[%s1 + $0x48] sm:$0xf]
      %v332 = vld [vmem:[%s1 + $0x4c] sm:$0xf]
      %v333 = vld [vmem:[%s1 + $0x50] sm:$0xf]
      %v334 = vld [vmem:[%s1 + $0x54] sm:$0xf]
      %v335 = vld [vmem:[%s1 + $0x58] sm:$0xf]
      %v336 = vld [vmem:[%s1 + $0x5c] sm:$0xf]
      %v337 = vld [vmem:[%s1 + $0x60] sm:$0xf]
      %v338 = vld [vmem:[%s2] sm:$0x1]
      %v339 = vperm.slane %v338, 0
      %v365 = vunpack.c.l.b16 %v313
      %v366 = vunpack.c.l.b16 %v314
      %v367 = vunpack.c.l.b16 %v315
      %v368 = vunpack.c.l.b16 %v316
      %v369 = vunpack.c.l.b16 %v317
      %v370 = vunpack.c.l.b16 %v318
      %v371 = vunpack.c.l.b16 %v319
      %v372 = vunpack.c.l.b16 %v320
      %v373 = vunpack.c.l.b16 %v321
      %v374 = vunpack.c.l.b16 %v322
      %v375 = vunpack.c.l.b16 %v323
      %v376 = vunpack.c.l.b16 %v324
      %v377 = vunpack.c.l.b16 %v325
      %v378 = vunpack.c.l.b16 %v326
      %v379 = vunpack.c.l.b16 %v327
      %v380 = vunpack.c.l.b16 %v328
      %v381 = vunpack.c.l.b16 %v329
      %v382 = vunpack.c.l.b16 %v330
      %v383 = vunpack.c.l.b16 %v331
      %v384 = vunpack.c.l.b16 %v332
      %v385 = vunpack.c.l.b16 %v333
      %v386 = vunpack.c.l.b16 %v334
      %v387 = vunpack.c.l.b16 %v335
      %v388 = vunpack.c.l.b16 %v336
      %v389 = vunpack.c.l.b16 %v337
      %v390 = vpack.c.b16 %v366, %v365
      %v391 = vpack.c.b16 %v368, %v367
      %v392 = vpack.c.b16 %v370, %v369
      %v393 = vpack.c.b16 %v372, %v371
      %v394 = vpack.c.b16 %v374, %v373
      %v395 = vpack.c.b16 %v376, %v375
      %v396 = vpack.c.b16 %v378, %v377
      %v397 = vpack.c.b16 %v380, %v379
      %v398 = vpack.c.b16 %v382, %v381
      %v399 = vpack.c.b16 %v384, %v383
      %v400 = vpack.c.b16 %v386, %v385
      %v401 = vpack.c.b16 %v388, %v387
      %v402 = vpack.c.b16 %v389, %v389
      %vm415 = vcmask 588800
      %v417 = vsel %vm415, %v312, 0
      %vm419 = vcmask 1043456
      %v421 = vsel %vm419, %v402, 0
      %423 = vmatpush.bf16.msra.mxu0 %v397
      %424 = vmatpush.bf16.msra.mxu0 %v396
      %425 = vmatpush.bf16.msra.mxu0 %v395
      %426 = vmatpush.bf16.msra.mxu0 %v394
      %427 = vmatpush.bf16.msra.mxu0 %v393
      %428 = vmatpush.bf16.msra.mxu0 %v392
      %429 = vmatpush.bf16.msra.mxu0 %v391
      %430 = vmatpush.bf16.msra.mxu0 %v390
      %431 = vmatmul.bf16.gmra.mxu0 %v311
      %v432 = vpop.f32.mrf.mxu0
      %v433 = vadd.f32 %v339, %v432
      %v434 = vpop.f32.mrf.mxu0
      %v435 = vadd.f32 %v339, %v434
      %436 = vdwg.mxu0
      %437 = vmatpush.bf16.msra.mxu0 0
      %438 = vmatpush.bf16.msra.mxu0 0
      %439 = vmatpush.bf16.msra.mxu0 0
      %440 = vmatpush.bf16.msra.mxu0 %v421
      %441 = vmatpush.bf16.msra.mxu0 %v401
      %442 = vmatpush.bf16.msra.mxu0 %v400
      %443 = vmatpush.bf16.msra.mxu0 %v399
      %444 = vmatpush.bf16.msra.mxu0 %v398
      %445 = vmatmul.bf16.gmra.mxu0 %v417
      %v446 = vpop.f32.mrf.mxu0
      %v447 = vadd.f32 %v433, %v446
      %v448 = vpop.f32.mrf.mxu0
      %v449 = vadd.f32 %v435, %v448
      %450 = vdwg.mxu0
      %451 = vadd.xlane.f32.xlu0 %v447
      %v452 = vpop.xlane.xlu0 %451
      %v453 = vsel %vm419, %v449, 0.0
      %454 = vadd.xlane.f32.xlu0 %v453
      %v455 = vpop.xlane.xlu0 %454
      %v456 = vrcp.pop 128.0
      %v457 = vmul.f32 128.0, %v456
      %v458 = vsub.f32 1.0, %v457
      %v459 = vmul.f32 %v456, %v458
      %v460 = vadd.f32 %v456, %v459
      %vm461 = vweird.f32 %v456
      %v462 = vsel %vm461, %v456, %v460
      %v463 = vmul.f32 %v452, %v462
      %v464 = vmul.f32 %v455, %v462
      %v465 = vsub.f32 %v447, %v463
      %v466 = vsub.f32 %v449, %v464
      %v467 = vmul.f32 %v465, %v465
      %v468 = vmul.f32 %v466, %v466
      %469 = vadd.xlane.f32.xlu0 %v467
      %v470 = vpop.xlane.xlu0 %469
      %v471 = vsel %vm419, %v468, 0.0
      %472 = vadd.xlane.f32.xlu0 %v471
      %v473 = vpop.xlane.xlu0 %472
      %v474 = vmul.f32 %v470, %v462
      %v475 = vmul.f32 %v473, %v462
      %v476 = vadd.f32 %v474, 1e-05
      %v477 = vadd.f32 %v475, 1e-05
      %v478 = vrsqrt.pop %v476
      %v479 = vmul.f32 %v478, %v476
      %v480 = vmul.f32 %v479, %v478
      %v481 = vmul.f32 0.5, %v480
      %v482 = vsub.f32 1.5, %v481
      %v483 = vmul.f32 %v478, %v482
      %vm484 = vweird.f32 %v476
      %vm485 = vweird.f32 %v478
      %vm486 = vmor %vm484, %vm485
      %v487 = vsel %vm486, %v478, %v483
      %v488 = vrsqrt.pop %v477
      %v489 = vmul.f32 %v488, %v477
      %v490 = vmul.f32 %v489, %v488
      %v491 = vmul.f32 0.5, %v490
      %v492 = vsub.f32 1.5, %v491
      %v493 = vmul.f32 %v488, %v492
      %vm494 = vweird.f32 %v477
      %vm495 = vweird.f32 %v488
      %vm496 = vmor %vm494, %vm495
      %v497 = vsel %vm496, %v488, %v493
      %v498 = vmul.f32 %v465, %v487
      %v499 = vmul.f32 %v466, %v497
      %v500 = vld [vmem:[%s2 + $0x1] sm:$0x1]
      %v501 = vperm.slane %v500, 0
      %v502 = vmul.f32 %v498, %v501
      %v503 = vmul.f32 %v499, %v501
      %v504 = vld [vmem:[%s2 + $0x2] sm:$0x1]
      %v505 = vperm.slane %v504, 0
      %v506 = vadd.f32 %v502, %v505
      %v507 = vadd.f32 %v503, %v505
      %v508 = vmax.f32 %v506, 0.0
      %v509 = vmax.f32 %v507, 0.0
      %v510 = vpack.c.bf16 %v509, %v508
      %v511 = vld [vmem:[%s3] sm:$0xf]
      %v512 = vld [vmem:[%s3 + $0x4] sm:$0xf]
      %v513 = vld [vmem:[%s3 + $0x8] sm:$0xf]
      %v514 = vld [vmem:[%s3 + $0xc] sm:$0xf]
      %v515 = vld [vmem:[%s3 + $0x10] sm:$0xf]
      %v516 = vld [vmem:[%s3 + $0x14] sm:$0xf]
      %v517 = vld [vmem:[%s3 + $0x18] sm:$0xf]
      %v518 = vld [vmem:[%s3 + $0x1c] sm:$0xf]
      %v519 = vld [vmem:[%s3 + $0x20] sm:$0xf]
      %v520 = vld [vmem:[%s3 + $0x24] sm:$0xf]
      %v521 = vld [vmem:[%s3 + $0x28] sm:$0xf]
      %v522 = vld [vmem:[%s3 + $0x2c] sm:$0xf]
      %v523 = vld [vmem:[%s3 + $0x30] sm:$0xf]
      %v524 = vld [vmem:[%s3 + $0x34] sm:$0xf]
      %v525 = vld [vmem:[%s3 + $0x38] sm:$0xf]
      %v526 = vld [vmem:[%s3 + $0x3c] sm:$0xf]
      %v527 = vld [vmem:[%s4] sm:$0x1]
      %v529 = vperm.slane %v527, 0
      %v547 = vunpack.c.l.b16 %v511
      %v548 = vunpack.c.l.b16 %v512
      %v549 = vunpack.c.l.b16 %v513
      %v550 = vunpack.c.l.b16 %v514
      %v551 = vunpack.c.l.b16 %v515
      %v552 = vunpack.c.l.b16 %v516
      %v553 = vunpack.c.l.b16 %v517
      %v554 = vunpack.c.l.b16 %v518
      %v555 = vunpack.c.l.b16 %v519
      %v556 = vunpack.c.l.b16 %v520
      %v557 = vunpack.c.l.b16 %v521
      %v558 = vunpack.c.l.b16 %v522
      %v559 = vunpack.c.l.b16 %v523
      %v560 = vunpack.c.l.b16 %v524
      %v561 = vunpack.c.l.b16 %v525
      %v562 = vunpack.c.l.b16 %v526
      %v563 = vpack.c.b16 %v548, %v547
      %v564 = vpack.c.b16 %v550, %v549
      %v565 = vpack.c.b16 %v552, %v551
      %v566 = vpack.c.b16 %v554, %v553
      %v567 = vpack.c.b16 %v556, %v555
      %v568 = vpack.c.b16 %v558, %v557
      %v569 = vpack.c.b16 %v560, %v559
      %v570 = vpack.c.b16 %v562, %v561
      %579 = vmatpush.bf16.msra.mxu0 %v570
      %580 = vmatpush.bf16.msra.mxu0 %v569
      %581 = vmatpush.bf16.msra.mxu0 %v568
      %582 = vmatpush.bf16.msra.mxu0 %v567
      %583 = vmatpush.bf16.msra.mxu0 %v566
      %584 = vmatpush.bf16.msra.mxu0 %v565
      %585 = vmatpush.bf16.msra.mxu0 %v564
      %586 = vmatpush.bf16.msra.mxu0 %v563
      %587 = vmatmul.bf16.gmra.mxu0 %v510
      %v588 = vpop.f32.mrf.mxu0
      %v589 = vadd.f32 %v529, %v588
      %v590 = vpop.f32.mrf.mxu0
      %v591 = vadd.f32 %v529, %v590
      %592 = vdwg.mxu0
      %vm593 = vcmask 523264
      %v594 = vsel %vm593, %v589, 0.0
      %vm595 = vcmask 519168
      %v596 = vsel %vm595, %v591, 0.0
      %v597 = vadd.f32 %v594, %v596
      %598 = vadd.xlane.f32.xlu0 %v597
      %v599 = vpop.xlane.xlu0 %598
      %v600 = vrot.slane %v599, 4
      %v601 = vadd.f32 %v599, %v600
      %v602 = vrot.slane %v601, 2
      %v603 = vadd.f32 %v601, %v602
      %v604 = vrot.slane %v603, 1
      %v605 = vadd.f32 %v603, %v604
      %s606 = vtos %v605
      %v607 = vrcp.pop 768.0
      %v608 = vmul.f32 768.0, %v607
      %v609 = vsub.f32 1.0, %v608
      %v610 = vmul.f32 %v607, %v609
      %v611 = vadd.f32 %v607, %v610
      %vm612 = vweird.f32 %v607
      %v613 = vsel %vm612, %v607, %v611
      %s614 = vtos %v613
      %s615 = smul.f32 %s606, %s614
      %v616 = vstv %s615
      %v617 = vsub.f32 %v589, %v616
      %v618 = vsub.f32 %v591, %v616
      %v619 = vmul.f32 %v617, %v617
      %v620 = vmul.f32 %v618, %v618
      %v621 = vsel %vm593, %v619, 0.0
      %v622 = vsel %vm595, %v620, 0.0
      %v623 = vadd.f32 %v621, %v622
      %624 = vadd.xlane.f32.xlu0 %v623
      %v625 = vpop.xlane.xlu0 %624
      %v626 = vrot.slane %v625, 4
      %v627 = vadd.f32 %v625, %v626
      %v628 = vrot.slane %v627, 2
      %v629 = vadd.f32 %v627, %v628
      %v630 = vrot.slane %v629, 1
      %v631 = vadd.f32 %v629, %v630
      %s632 = vtos %v631
      %v633 = vrcp.pop 768.0
      %v634 = vmul.f32 768.0, %v633
      %v635 = vsub.f32 1.0, %v634
      %v636 = vmul.f32 %v633, %v635
      %v637 = vadd.f32 %v633, %v636
      %vm638 = vweird.f32 %v633
      %v639 = vsel %vm638, %v633, %v637
      %s640 = vtos %v639
      %s641 = smul.f32 %s632, %s640
      %s642 = sadd.f32 %s641, 1e-05
      %v643 = vstv %s642
      %v644 = vrsqrt.pop %v643
      %v645 = vmul.f32 %v644, %v643
      %v646 = vmul.f32 %v645, %v644
      %v647 = vmul.f32 0.5, %v646
      %v648 = vsub.f32 1.5, %v647
      %v649 = vmul.f32 %v644, %v648
      %vm650 = vweird.f32 %v643
      %vm651 = vweird.f32 %v644
      %vm652 = vmor %vm650, %vm651
      %v653 = vsel %vm652, %v644, %v649
      %s654 = vtos %v653
      %v655 = vstv %s654
      %v656 = vmul.f32 %v617, %v655
      %v657 = vmul.f32 %v618, %v655
      %v658 = vld [vmem:[%s5] sm:$0xff]
      %v659 = vld [vmem:[%s5 + $0x8] sm:$0xf]
      %v660 = vmul.f32 %v656, %v658
      %v661 = vmul.f32 %v657, %v659
      %s662 = scalar_lea.vmem %s5, 16
      %v663 = vld [vmem:[%s662] sm:$0xff]
      %v664 = vld [vmem:[%s662 + $0x8] sm:$0xf]
      %v665 = vadd.f32 %v660, %v663
      %v666 = vadd.f32 %v661, %v664
      %v667 = vmax.f32 %v665, 0.0
      %v668 = vmax.f32 %v666, 0.0
      %v669 = vsel %vm593, %v667, 0.0
      %v670 = vsel %vm595, %v668, 0.0
      %v671 = vadd.f32 %v669, %v670
      %672 = vadd.xlane.f32.xlu0 %v671
      %v673 = vpop.xlane.xlu0 %672
      %v674 = vrot.slane %v673, 4
      %v675 = vadd.f32 %v673, %v674
      %v676 = vrot.slane %v675, 2
      %v677 = vadd.f32 %v675, %v676
      %v678 = vrot.slane %v677, 1
      %v679 = vadd.f32 %v677, %v678
      %s680 = vtos %v679
      %v681 = vrcp.pop 768.0
      %v682 = vmul.f32 768.0, %v681
      %v683 = vsub.f32 1.0, %v682
      %v684 = vmul.f32 %v681, %v683
      %v685 = vadd.f32 %v681, %v684
      %vm686 = vweird.f32 %v681
      %v687 = vsel %vm686, %v681, %v685
      %s688 = vtos %v687
      %s689 = smul.f32 %s680, %s688
      %v690 = vstv %s689
      %v691 = vsub.f32 %v667, %v690
      %v692 = vsub.f32 %v668, %v690
      %v693 = vmul.f32 %v691, %v691
      %v694 = vmul.f32 %v692, %v692
      %v695 = vsel %vm593, %v693, 0.0
      %v696 = vsel %vm595, %v694, 0.0
      %v697 = vadd.f32 %v695, %v696
      %698 = vadd.xlane.f32.xlu0 %v697
      %v699 = vpop.xlane.xlu0 %698
      %v700 = vrot.slane %v699, 4
      %v701 = vadd.f32 %v699, %v700
      %v702 = vrot.slane %v701, 2
      %v703 = vadd.f32 %v701, %v702
      %v704 = vrot.slane %v703, 1
      %v705 = vadd.f32 %v703, %v704
      %s706 = vtos %v705
      %v707 = vrcp.pop 768.0
      %v708 = vmul.f32 768.0, %v707
      %v709 = vsub.f32 1.0, %v708
      %v710 = vmul.f32 %v707, %v709
      %v711 = vadd.f32 %v707, %v710
      %vm712 = vweird.f32 %v707
      %v713 = vsel %vm712, %v707, %v711
      %s714 = vtos %v713
      %s715 = smul.f32 %s706, %s714
      %s716 = sadd.f32 %s715, 1e-05
      %v717 = vstv %s716
      %v718 = vrsqrt.pop %v717
      %v719 = vmul.f32 %v718, %v717
      %v720 = vmul.f32 %v719, %v718
      %v721 = vmul.f32 0.5, %v720
      %v722 = vsub.f32 1.5, %v721
      %v723 = vmul.f32 %v718, %v722
      %vm724 = vweird.f32 %v717
      %vm725 = vweird.f32 %v718
      %vm726 = vmor %vm724, %vm725
      %v727 = vsel %vm726, %v718, %v723
      %s728 = vtos %v727
      %v729 = vstv %s728
      %v730 = vmul.f32 %v691, %v729
      %v731 = vmul.f32 %v692, %v729
      %s732 = scalar_lea.vmem %s5, 32
      %v733 = vld [vmem:[%s732] sm:$0xff]
      %v734 = vld [vmem:[%s732 + $0x8] sm:$0xf]
      %v735 = vmul.f32 %v730, %v733
      %v736 = vmul.f32 %v731, %v734
      %s737 = scalar_lea.vmem %s5, 48
      %v738 = vld [vmem:[%s737] sm:$0xff]
      %v739 = vld [vmem:[%s737 + $0x8] sm:$0xf]
      %v740 = vadd.f32 %v735, %v738
      %v741 = vadd.f32 %v736, %v739
      %v742 = vmax.f32 %v740, 0.0
      %v743 = vmax.f32 %v741, 0.0
      %v744 = vadd.f32 %v742, %v667
      %v745 = vadd.f32 %v743, %v668
      %v747 = vrot.slane %v744, 4
      %v749 = vmax.f32 %v744, %v747
      %v750 = vmax.f32 %v749, %v745
      %v751 = vsel %vm595, %v750, -inf
      %v752 = vrot.slane %v751, 4
      %v753 = vmax.f32 %v751, %v752
      %v754 = vrot.slane %v753, 2
      %v755 = vmax.f32 %v753, %v754
      %v756 = vrot.slane %v755, 1
      %v757 = vmax.f32 %v755, %v756
      %v759 = vrot.slane %v750, 7
      %vm761 = vcmask 1040384
      %v762 = vsel %vm761, %v757, %v759
      %v763 = vpack.c.bf16 %v762, %v762
      %v764 = vld [vmem:[%s6] sm:$0xf]
      %v765 = vld [vmem:[%s6 + $0x4] sm:$0xf]
      %v766 = vld [vmem:[%s6 + $0x8] sm:$0xf]
      %v767 = vld [vmem:[%s6 + $0xc] sm:$0xf]
      %v768 = vld [vmem:[%s6 + $0x10] sm:$0xf]
      %v769 = vld [vmem:[%s6 + $0x14] sm:$0xf]
      %v770 = vld [vmem:[%s6 + $0x18] sm:$0xf]
      %v771 = vld [vmem:[%s6 + $0x1c] sm:$0xf]
      %v772 = vld [vmem:[%s7] sm:$0x1]
      %v774 = vperm.slane %v772, 0
      %v784 = vunpack.c.l.b16 %v764
      %v785 = vunpack.c.l.b16 %v765
      %v786 = vunpack.c.l.b16 %v766
      %v787 = vunpack.c.l.b16 %v767
      %v788 = vunpack.c.l.b16 %v768
      %v789 = vunpack.c.l.b16 %v769
      %v790 = vunpack.c.l.b16 %v770
      %v791 = vunpack.c.l.b16 %v771
      %v792 = vpack.c.b16 %v785, %v784
      %v793 = vpack.c.b16 %v787, %v786
      %v794 = vpack.c.b16 %v789, %v788
      %v795 = vpack.c.b16 %v791, %v790
      %v801 = vsel %vm593, %v763, 0
      %803 = vmatpush.bf16.msra.mxu0 0
      %804 = vmatpush.bf16.msra.mxu0 0
      %805 = vmatpush.bf16.msra.mxu0 0
      %806 = vmatpush.bf16.msra.mxu0 0
      %807 = vmatpush.bf16.msra.mxu0 %v795
      %808 = vmatpush.bf16.msra.mxu0 %v794
      %809 = vmatpush.bf16.msra.mxu0 %v793
      %810 = vmatpush.bf16.msra.mxu0 %v792
      %811 = vmatmul.bf16.gmra.mxu0 %v801
      %v812 = vpop.f32.mrf.mxu0
      %v813 = vadd.f32 %v774, %v812
      %v814 = vpop.f32.mrf.mxu0
      %815 = vdwg.mxu0
      %v816 = vsel %vm593, %v762, 0.0
      %v818 = vrot.slane %v813, 3
      %vm820 = vcmask 1044480
      %v821 = vsel %vm820, %v816, %v818
      %822 = vst [vmem:[%s305] sm:$0xff] %v821
      %823 = vst [vmem:[%s305 + $0x8] sm:$0x3] %v818
      %p824 = scmp.lt.s32.totalorder %s19, 1
      %s825 = scalar_select %p824, %s19, 1
      %s826 = smul.addr %s825, 2
      %s827 = smul.addr %s826, 8
      %s828 = scalar_lea.vmem %s8, %s827
      // Predicated region
      $region53: #{group_relation_forward.1} parent=51 // pred_check
        %p829 = pneg %p210
      $region54: #{group_relation_forward.1} parent=51 // pred_check_branch
        %831 = sbr.rel (%p829) target = $region56
      $region55: #{group_relation_forward.1} parent=51 // pred_region
        _
      $region56: #{group_relation_forward.1} parent=51 // pred_fallthru
        _
    $region52: #{group_relation_forward.1} parent=5 // pred_fallthru
      _
    %p832 = scmp.le.s32.totalorder 2, %s14
    // Predicated region
    $region57: #{group_relation_forward.1} parent=5 // pred_check
      %p833 = pneg %p832
    $region58: #{group_relation_forward.1} parent=5 // pred_check_branch
      %835 = sbr.rel (%p833) target = $region60
    $region59: #{group_relation_forward.1} parent=5 // pred_region
      %s836 = ssub.s32 %s14, 2
      // Predicated region
      $region61: #{group_relation_forward.1} parent=59 // pred_check
        %p837 = pneg %p216
      $region62: #{group_relation_forward.1} parent=59 // pred_check_branch
        %839 = sbr.rel (%p837) target = $region64
      $region63: #{group_relation_forward.1} parent=59 // pred_region
        %p840 = scmp.lt.s32.totalorder %s20, 1
        %s841 = scalar_select %p840, %s20, 1
        %s842 = smul.addr %s841, 2
        %s843 = smul.addr %s842, 8
        %s844 = scalar_lea.vmem %s8, %s843
      $region64: #{group_relation_forward.1} parent=59 // pred_fallthru
        _
    $region60: #{group_relation_forward.1} parent=5 // pred_fallthru
      _
  $region6: #{group_relation_forward.1} parent=0 // loop_footer
    %s18 = sadd.s32 1, %s14
  $region7: #{group_relation_forward.1} parent=0 // loop_footer_branch
    %13 = sbr.rel target = $region3
  $region8: #{group_relation_forward.1} parent=0 // loop_exit
    _

</llo_original>
